<compile_context>
chip_gen: v7x
topology: tpu7x:2x2x1
jax: 0.10.0
libtpu: 0.0.40
codegen_flags: <defaults>
</compile_context>

<pallas_src>
import jax
import jax.numpy as jnp
from jax.experimental import pallas as pl
from jax.experimental.pallas import tpu as pltpu


def _round_up(x, m):
    return (x + m - 1) // m * m


def gin_kernel(mask_ref, adj_ref, x_ref, w1_ref, b1_ref, w2_ref, b2_ref,
               o_ref, acc_ref):
    # mask_ref: (GI, GK) int32 in SMEM (scalar prefetch) — nonzero adj-block map
    # adj_ref : (TM, TK)        bf16 adjacency(+I) tile
    # x_ref   : (TK, F_IN_P)    bf16 node-feature tile
    # w1_ref  : (F_IN_P, F_OUT_P), w2_ref: (F_OUT_P, F_OUT_P)   bf16 (pre-transposed)
    # b1_ref / b2_ref: (1, F_OUT_P) f32
    # o_ref   : (TM, F_OUT_P)
    # acc_ref : (TM, F_IN_P) f32 VMEM accumulator for (adj + I) @ x
    i = pl.program_id(0)
    k = pl.program_id(1)

    @pl.when(k == 0)
    def _init():
        acc_ref[...] = jnp.zeros_like(acc_ref)

    @pl.when(mask_ref[i, k] != 0)          # skip MXU work on all-zero adj blocks
    def _accumulate():
        acc_ref[...] += jnp.dot(adj_ref[...], x_ref[...],
                                preferred_element_type=jnp.float32)

    @pl.when(k == pl.num_programs(1) - 1)
    def _finalize():
        total = acc_ref[...]               # == adj @ x + x  (identity folded into adj)
        h1 = jnp.maximum(
            jnp.dot(total.astype(w1_ref.dtype), w1_ref[...],
                    preferred_element_type=jnp.float32) + b1_ref[...], 0.0)
        h2 = jnp.maximum(
            jnp.dot(h1.astype(w2_ref.dtype), w2_ref[...],
                    preferred_element_type=jnp.float32) + b2_ref[...], 0.0)
        o_ref[...] = h2.astype(o_ref.dtype)


def gin_layer(x, adj, w1, b1, w2, b2, *, tm=128, tk=128,
              compute_dtype=jnp.bfloat16):
    """GIN layer forward. x: [N, F_in], adj: [N, N], w1: [F_in, F_out],
    w2: [F_out, F_out] (already transposed vs torch Linear.weight). Returns [N, F_out]."""
    n, f_in = x.shape
    f_out = w1.shape[1]
    assert adj.shape == (n, n)
    assert w1.shape[0] == f_in and w2.shape == (f_out, f_out)
    assert max(tm, tk) % min(tm, tk) == 0

    # Fold the self-feature add into the adjacency: (adj + I) @ x == adj @ x + x.
    adj_hat = adj.astype(jnp.float32) + jnp.eye(n, dtype=jnp.float32)

    # Pad node count to the tile grid and feature dims to 128 lanes (lane-dense).
    n_p = _round_up(n, max(tm, tk))
    f_in_p = _round_up(f_in, 128)
    f_out_p = _round_up(f_out, 128)

    adj_p = jnp.zeros((n_p, n_p), compute_dtype).at[:n, :n].set(
        adj_hat.astype(compute_dtype))
    x_p = jnp.zeros((n_p, f_in_p), compute_dtype).at[:n, :f_in].set(
        x.astype(compute_dtype))
    w1_p = jnp.zeros((f_in_p, f_out_p), compute_dtype).at[:f_in, :f_out].set(
        w1.astype(compute_dtype))
    w2_p = jnp.zeros((f_out_p, f_out_p), compute_dtype).at[:f_out, :f_out].set(
        w2.astype(compute_dtype))
    b1_p = jnp.zeros((1, f_out_p), jnp.float32).at[:, :f_out].set(
        b1.reshape(1, f_out).astype(jnp.float32))
    b2_p = jnp.zeros((1, f_out_p), jnp.float32).at[:, :f_out].set(
        b2.reshape(1, f_out).astype(jnp.float32))

    gi, gk = n_p // tm, n_p // tk

    # Per-(row-block, k-block) nonzero map of adj_hat (scalar prefetch).
    mask = jnp.any(adj_p.reshape(gi, tm, gk, tk) != 0, axis=(1, 3)).astype(jnp.int32)

    # Explicit scoped-VMEM budget (v7x has only 64 MiB physical VMEM per TC).
    cb = jnp.dtype(compute_dtype).itemsize
    ob = jnp.dtype(x.dtype).itemsize
    est = (2 * tm * tk * cb                       # adj tiles (double-buffered)
           + 2 * tk * f_in_p * cb                 # x tiles
           + 2 * (f_in_p + f_out_p) * f_out_p * cb   # weights
           + 4 * f_out_p * 4                      # biases
           + tm * f_in_p * 4                      # accumulator scratch
           + 2 * tm * f_out_p * ob)               # output tiles
    vmem_limit = int(min(max(2 * est, 16 * 2 ** 20), 64 * 2 ** 20))

    out_p = pl.pallas_call(
        gin_kernel,
        out_shape=jax.ShapeDtypeStruct((n_p, f_out_p), x.dtype),
        grid_spec=pltpu.PrefetchScalarGridSpec(
            num_scalar_prefetch=1,
            grid=(gi, gk),
            in_specs=[
                pl.BlockSpec((tm, tk), lambda i, k, m: (i, k)),           # adj_hat tile
                pl.BlockSpec((tk, f_in_p), lambda i, k, m: (k, 0)),       # x tile
                pl.BlockSpec((f_in_p, f_out_p), lambda i, k, m: (0, 0)),  # W1
                pl.BlockSpec((1, f_out_p), lambda i, k, m: (0, 0)),       # b1
                pl.BlockSpec((f_out_p, f_out_p), lambda i, k, m: (0, 0)), # W2
                pl.BlockSpec((1, f_out_p), lambda i, k, m: (0, 0)),       # b2
            ],
            out_specs=pl.BlockSpec((tm, f_out_p), lambda i, k, m: (i, 0)),
            scratch_shapes=[pltpu.VMEM((tm, f_in_p), jnp.float32)],
        ),
        compiler_params=pltpu.CompilerParams(
            dimension_semantics=("parallel", "arbitrary"),
            vmem_limit_bytes=vmem_limit,
        ),
    )(mask, adj_p, x_p, w1_p, b1_p, w2_p, b2_p)

    return out_p[:n, :f_out]


if __name__ == "__main__":
    N = 256          # number of graph nodes (2 row blocks x 2 k blocks at tm=tk=128)
    F_IN = 32        # in_features
    F_OUT = 32       # out_features

    key = jax.random.PRNGKey(0)
    kx, kadj, kw1, kb1, kw2, kb2 = jax.random.split(key, 6)

    x = jax.random.normal(kx, (N, F_IN), dtype=jnp.float32)
    a = (jax.random.uniform(kadj, (N, N)) < 0.1).astype(jnp.float32)
    adj = jnp.maximum(a, a.T)                     # symmetric binary adjacency

    lim1 = float(1.0 / jnp.sqrt(F_IN))
    lim2 = float(1.0 / jnp.sqrt(F_OUT))
    w1 = jax.random.uniform(kw1, (F_IN, F_OUT), minval=-lim1, maxval=lim1, dtype=jnp.float32)
    b1 = jax.random.uniform(kb1, (1, F_OUT), minval=-lim1, maxval=lim1, dtype=jnp.float32)
    w2 = jax.random.uniform(kw2, (F_OUT, F_OUT), minval=-lim2, maxval=lim2, dtype=jnp.float32)
    b2 = jax.random.uniform(kb2, (1, F_OUT), minval=-lim2, maxval=lim2, dtype=jnp.float32)

    out = gin_layer(x, adj, w1, b1, w2, b2, tm=128, tk=128)
    jax.block_until_ready(out)
    assert out.shape == (N, F_OUT)

    # Reference 1: same bf16-operand / f32-accumulate quantisation as the kernel (tight).
    bf = jnp.bfloat16
    adj_hat = adj + jnp.eye(N, dtype=jnp.float32)
    total = jnp.dot(adj_hat.astype(bf), x.astype(bf), preferred_element_type=jnp.float32)
    r1 = jnp.maximum(jnp.dot(total.astype(bf), w1.astype(bf),
                             preferred_element_type=jnp.float32) + b1, 0.0)
    r1 = jnp.maximum(jnp.dot(r1.astype(bf), w2.astype(bf),
                             preferred_element_type=jnp.float32) + b2, 0.0)
    assert jnp.allclose(out, r1, atol=1e-3, rtol=1e-3), "mismatch vs bf16-matched reference"

    # Reference 2: pure f32 PyTorch semantics (loose tolerance for bf16 matmul operands).
    total32 = adj @ x + x
    r2 = jnp.maximum(total32 @ w1 + b1, 0.0)
    r2 = jnp.maximum(r2 @ w2 + b2, 0.0)
    assert jnp.allclose(out, r2, atol=1e-1, rtol=1e-1), "mismatch vs f32 reference"

    print("KERNEL_OK")
</pallas_src>

<mosaic_0001>
module attributes {stable_mosaic.version = 11 : i64} {
  func.func @gin_kernel(%arg0: i32, %arg1: i32, %arg2: memref<2x2xi32, #tpu.memory_space<smem>>, %arg3: memref<128x128xbf16, #tpu.memory_space<vmem>>, %arg4: memref<128x128xbf16, #tpu.memory_space<vmem>>, %arg5: memref<128x128xbf16, #tpu.memory_space<vmem>>, %arg6: memref<1x128xf32, #tpu.memory_space<vmem>>, %arg7: memref<128x128xbf16, #tpu.memory_space<vmem>>, %arg8: memref<1x128xf32, #tpu.memory_space<vmem>>, %arg9: memref<128x128xf32, #tpu.memory_space<vmem>>, %arg10: memref<128x128xf32, #tpu.memory_space<vmem>>) attributes {dimension_semantics = [#tpu.dimension_semantics<parallel>, #tpu.dimension_semantics<arbitrary>], iteration_bounds = array<i64: 2, 2>, scalar_prefetch = 1 : i64, scratch_operands = 1 : i64, tpu.core_type = #tpu.core_type<tc>, window_params = [{transform_indices = @transform_0, window_bounds = array<i64: 128, 128>}, {transform_indices = @transform_1, window_bounds = array<i64: 128, 128>}, {pipeline_mode = #tpu.pipeline_mode<synchronous>, transform_indices = @transform_2, window_bounds = array<i64: 128, 128>}, {pipeline_mode = #tpu.pipeline_mode<synchronous>, transform_indices = @transform_3, window_bounds = array<i64: 1, 128>}, {pipeline_mode = #tpu.pipeline_mode<synchronous>, transform_indices = @transform_4, window_bounds = array<i64: 128, 128>}, {pipeline_mode = #tpu.pipeline_mode<synchronous>, transform_indices = @transform_5, window_bounds = array<i64: 1, 128>}, {transform_indices = @transform_6, window_bounds = array<i64: 128, 128>}]} {
    %c0_i32 = arith.constant 0 : i32
    %0 = arith.cmpi eq, %arg1, %c0_i32 : i32
    %1 = arith.extui %0 : i1 to i32
    %c0_i32_0 = arith.constant 0 : i32
    %2 = arith.cmpi ne, %1, %c0_i32_0 : i32
    scf.if %2 {
      %cst = arith.constant 0.000000e+00 : f32
      %12 = vector.broadcast %cst : f32 to vector<128x128xf32>
      %c0 = arith.constant 0 : index
      %c0_4 = arith.constant 0 : index
      %13 = vector.load %arg10[%c0, %c0_4] : memref<128x128xf32, #tpu.memory_space<vmem>>, vector<128x128xf32>
      tpu.vector_store %arg10[%c0, %c0_4], %12 {strides = array<i32>} : memref<128x128xf32, #tpu.memory_space<vmem>>, vector<128x128xf32>,
    } else {
    }
    %3 = arith.index_cast %arg0 : i32 to index
    %4 = arith.index_cast %arg1 : i32 to index
    %5 = memref.load %arg2[%3, %4] : memref<2x2xi32, #tpu.memory_space<smem>>
    %c0_i32_1 = arith.constant 0 : i32
    %6 = arith.cmpi ne, %5, %c0_i32_1 : i32
    %7 = arith.extui %6 : i1 to i32
    %c0_i32_2 = arith.constant 0 : i32
    %8 = arith.cmpi ne, %7, %c0_i32_2 : i32
    scf.if %8 {
      %c0 = arith.constant 0 : index
      %c0_4 = arith.constant 0 : index
      %12 = vector.load %arg10[%c0, %c0_4] : memref<128x128xf32, #tpu.memory_space<vmem>>, vector<128x128xf32>
      %c0_5 = arith.constant 0 : index
      %c0_6 = arith.constant 0 : index
      %13 = vector.load %arg3[%c0_5, %c0_6] : memref<128x128xbf16, #tpu.memory_space<vmem>>, vector<128x128xbf16>
      %c0_7 = arith.constant 0 : index
      %c0_8 = arith.constant 0 : index
      %14 = vector.load %arg4[%c0_7, %c0_8] : memref<128x128xbf16, #tpu.memory_space<vmem>>, vector<128x128xbf16>
      %cst = arith.constant dense<0.000000e+00> : vector<128x128xf32>
      %15 = tpu.matmul %13, %14, %cst {dimension_numbers = #tpu.dot_dimension_numbers<[1], [0], [0], [1], [0, 0, 1, 1], [], []>} : vector<128x128xbf16>, vector<128x128xbf16>, vector<128x128xf32> -> vector<128x128xf32>
      %16 = arith.addf %12, %15 : vector<128x128xf32>
      %c0_9 = arith.constant 0 : index
      %c0_10 = arith.constant 0 : index
      %17 = vector.load %arg10[%c0_9, %c0_10] : memref<128x128xf32, #tpu.memory_space<vmem>>, vector<128x128xf32>
      tpu.vector_store %arg10[%c0_9, %c0_10], %16 {strides = array<i32>} : memref<128x128xf32, #tpu.memory_space<vmem>>, vector<128x128xf32>,
    } else {
    }
    %c1_i32 = arith.constant 1 : i32
    %9 = arith.cmpi eq, %arg1, %c1_i32 : i32
    %10 = arith.extui %9 : i1 to i32
    %c0_i32_3 = arith.constant 0 : i32
    %11 = arith.cmpi ne, %10, %c0_i32_3 : i32
    scf.if %11 {
      %c0 = arith.constant 0 : index
      %c0_4 = arith.constant 0 : index
      %12 = vector.load %arg10[%c0, %c0_4] : memref<128x128xf32, #tpu.memory_space<vmem>>, vector<128x128xf32>
      %13 = arith.truncf %12 : vector<128x128xf32> to vector<128x128xbf16>
      %c0_5 = arith.constant 0 : index
      %c0_6 = arith.constant 0 : index
      %14 = vector.load %arg5[%c0_5, %c0_6] : memref<128x128xbf16, #tpu.memory_space<vmem>>, vector<128x128xbf16>
      %cst = arith.constant dense<0.000000e+00> : vector<128x128xf32>
      %15 = tpu.matmul %13, %14, %cst {dimension_numbers = #tpu.dot_dimension_numbers<[1], [0], [0], [1], [0, 0, 1, 1], [], []>} : vector<128x128xbf16>, vector<128x128xbf16>, vector<128x128xf32> -> vector<128x128xf32>
      %c0_7 = arith.constant 0 : index
      %c0_8 = arith.constant 0 : index
      %16 = vector.load %arg6[%c0_7, %c0_8] : memref<1x128xf32, #tpu.memory_space<vmem>>, vector<1x128xf32>
      %17 = vector.broadcast %16 : vector<1x128xf32> to vector<128x128xf32>
      %18 = arith.addf %15, %17 : vector<128x128xf32>
      %cst_9 = arith.constant 0.000000e+00 : f32
      %19 = vector.broadcast %cst_9 : f32 to vector<128x128xf32>
      %20 = arith.maximumf %18, %19 : vector<128x128xf32>
      %21 = arith.truncf %20 : vector<128x128xf32> to vector<128x128xbf16>
      %c0_10 = arith.constant 0 : index
      %c0_11 = arith.constant 0 : index
      %22 = vector.load %arg7[%c0_10, %c0_11] : memref<128x128xbf16, #tpu.memory_space<vmem>>, vector<128x128xbf16>
      %cst_12 = arith.constant dense<0.000000e+00> : vector<128x128xf32>
      %23 = tpu.matmul %21, %22, %cst_12 {dimension_numbers = #tpu.dot_dimension_numbers<[1], [0], [0], [1], [0, 0, 1, 1], [], []>} : vector<128x128xbf16>, vector<128x128xbf16>, vector<128x128xf32> -> vector<128x128xf32>
      %c0_13 = arith.constant 0 : index
      %c0_14 = arith.constant 0 : index
      %24 = vector.load %arg8[%c0_13, %c0_14] : memref<1x128xf32, #tpu.memory_space<vmem>>, vector<1x128xf32>
      %25 = vector.broadcast %24 : vector<1x128xf32> to vector<128x128xf32>
      %26 = arith.addf %23, %25 : vector<128x128xf32>
      %cst_15 = arith.constant 0.000000e+00 : f32
      %27 = vector.broadcast %cst_15 : f32 to vector<128x128xf32>
      %28 = arith.maximumf %26, %27 : vector<128x128xf32>
      %c0_16 = arith.constant 0 : index
      %c0_17 = arith.constant 0 : index
      %29 = vector.load %arg9[%c0_16, %c0_17] : memref<128x128xf32, #tpu.memory_space<vmem>>, vector<128x128xf32>
      tpu.vector_store %arg9[%c0_16, %c0_17], %28 {strides = array<i32>} : memref<128x128xf32, #tpu.memory_space<vmem>>, vector<128x128xf32>,
    } else {
    }
    return
  }
  func.func @transform_0(%arg0: i32, %arg1: i32, %arg2: memref<2x2xi32, #tpu.memory_space<smem>>) -> (i32, i32) {
    %c0_i32 = arith.constant 0 : i32
    return %arg0, %arg1 : i32, i32
  }
  func.func @transform_1(%arg0: i32, %arg1: i32, %arg2: memref<2x2xi32, #tpu.memory_space<smem>>) -> (i32, i32) {
    %c0_i32 = arith.constant 0 : i32
    %c0_i32_0 = arith.constant 0 : i32
    return %arg1, %c0_i32 : i32, i32
  }
  func.func @transform_2(%arg0: i32, %arg1: i32, %arg2: memref<2x2xi32, #tpu.memory_space<smem>>) -> (i32, i32) {
    %c0_i32 = arith.constant 0 : i32
    %c0_i32_0 = arith.constant 0 : i32
    %c0_i32_1 = arith.constant 0 : i32
    return %c0_i32, %c0_i32_0 : i32, i32
  }
  func.func @transform_3(%arg0: i32, %arg1: i32, %arg2: memref<2x2xi32, #tpu.memory_space<smem>>) -> (i32, i32) {
    %c0_i32 = arith.constant 0 : i32
    %c0_i32_0 = arith.constant 0 : i32
    %c0_i32_1 = arith.constant 0 : i32
    return %c0_i32, %c0_i32_0 : i32, i32
  }
  func.func @transform_4(%arg0: i32, %arg1: i32, %arg2: memref<2x2xi32, #tpu.memory_space<smem>>) -> (i32, i32) {
    %c0_i32 = arith.constant 0 : i32
    %c0_i32_0 = arith.constant 0 : i32
    %c0_i32_1 = arith.constant 0 : i32
    return %c0_i32, %c0_i32_0 : i32, i32
  }
  func.func @transform_5(%arg0: i32, %arg1: i32, %arg2: memref<2x2xi32, #tpu.memory_space<smem>>) -> (i32, i32) {
    %c0_i32 = arith.constant 0 : i32
    %c0_i32_0 = arith.constant 0 : i32
    %c0_i32_1 = arith.constant 0 : i32
    return %c0_i32, %c0_i32_0 : i32, i32
  }
  func.func @transform_6(%arg0: i32, %arg1: i32, %arg2: memref<2x2xi32, #tpu.memory_space<smem>>) -> (i32, i32) {
    %c0_i32 = arith.constant 0 : i32
    %c0_i32_0 = arith.constant 0 : i32
    return %arg0, %c0_i32 : i32, i32
  }
}

</mosaic_0001>

<llo_original>
// kernel: tpu_custom_call.1
$region0: #{tpu_custom_call.1}
  #allocation0 [shape = 'u32[]', space=smem, size = 0x4, offset = 0x4, fixed_abs, tag = 'smem constant byte address 0x4 - core index']
  #allocation1 [shape = 'u32[144,128]{1,0:T(1,128)}', space=vmem, size = 0x12000, scoped, tag = 'internal scratch']
  #allocation2 [shape = 'f32[128,128]{1,0:T(8,128)}', space=vmem, size = 0x10000, scoped, tag = 'scratch operand']
  #allocation3 [shape = 's32[1]{0}', space=sflag, size = 0x4, scoped, tag = 'scoped memory for tpu_custom_call.1']
  #allocation4 [shape = 'u8[1024]{0}', space=smem, size = 0x400, scoped, tag = 'prefetched SMEM operand 0']
  %s0 = inlined_call_operand.hbm [shape: s32[2,2], index: 0, kind: input, shape index: {}]
  %s1 = inlined_call_operand.hbm [shape: bf16[256,256], index: 1, kind: input, shape index: {}]
  %s2 = inlined_call_operand.hbm [shape: bf16[256,128], index: 2, kind: input, shape index: {}]
  %s3 = inlined_call_operand.hbm [shape: bf16[128,128], index: 3, kind: input, shape index: {}]
  %s4 = inlined_call_operand.vmem [shape: f32[1,128], index: 4, kind: input, shape index: {}]
  %s5 = inlined_call_operand.hbm [shape: bf16[128,128], index: 5, kind: input, shape index: {}]
  %s6 = inlined_call_operand.vmem [shape: f32[1,128], index: 6, kind: input, shape index: {}]
  %s7 = inlined_call_operand.hbm [shape: f32[256,128], index: 7, kind: output, shape index: {}]
  %s8 = sld [smem:[#allocation0]]
  $region85: #{tpu_custom_call.1} parent=0
    _
  %s10 = ssub.s32 1, %s8
  %s11 = scalar_select 0, %s10, %s8
  %13 = dma.hbm_to_smem %s0, 32, [#allocation4], [#allocation3]
  %14 = dma.done [#allocation3], 32
  %15 = sfence
  $region1: #{tpu_custom_call.1} parent=0
    #allocation5 [shape = 'u8[65536]{0}', space=vmem, size = 0x10000, scoped, tag = 'input window, operand 1']
    #allocation6 [shape = 's32[2]{0}', space=sflag, size = 0x8, scoped, tag = 'scoped memory for tpu_custom_call.1']
    #allocation7 [shape = 's32[2]{0}', space=sflag, size = 0x8, scoped, tag = 'scoped memory for tpu_custom_call.1']
    #allocation8 [shape = 'u8[65536]{0}', space=vmem, size = 0x10000, scoped, tag = 'input window, operand 2']
    #allocation9 [shape = 's32[2]{0}', space=sflag, size = 0x8, scoped, tag = 'scoped memory for tpu_custom_call.1']
    #allocation10 [shape = 'u8[32768]{0}', space=vmem, size = 0x8000, scoped, tag = 'input window, operand 3, single buffered']
    #allocation11 [shape = 'u8[32768]{0}', space=vmem, size = 0x8000, scoped, tag = 'input window, operand 5, single buffered']
    #allocation12 [shape = 's32[1]{0}', space=sflag, size = 0x4, scoped, tag = 'scoped memory for tpu_custom_call.1']
    #allocation13 [shape = 'u8[131072]{0}', space=vmem, size = 0x20000, scoped, tag = 'output window, operand 0']
    %16 = vsyncpa [#allocation6], 0
    %s17 = scalar_lea.sflag [#allocation6], 1
    %18 = vsyncpa %s17, 0
    %19 = vsyncpa [#allocation9], 0
    %s20 = scalar_lea.sflag [#allocation9], 1
    %21 = vsyncpa %s20, 0
    %22 = vsyncpa [#allocation12], 0
    %23 = vsyncpa [#allocation7], 0
    %s24 = scalar_lea.sflag [#allocation7], 1
    %25 = vsyncpa %s24, 0
    loop: start=0, step=1, limit=6
    $region2: #{tpu_custom_call.1} parent=1 // loop_pre_header
      _
    $region3: #{tpu_custom_call.1} parent=1 // loop_header
      %s27 = sphi 0, %s31
      %p28 = scmp.ge.s32.totalorder %s27, 6
      %s34 = sphi 0, %s46
      %s35 = sphi 0, %s42
      %s36 = sphi 0, %s34
      %s37 = sphi 0, %s35
      %s38 = sphi 0, %s36
      %s39 = sphi 0, %s37
      %s51 = sphi 0, %s53
      %s54 = sphi 0, %s51
      %s55 = sphi 0, %s54
      %s71 = sphi 0, %s55
      %s77 = sphi 0, %s79
      %s80 = sphi 0, %s77
      %s81 = sphi 0, %s80
      %s97 = sphi 0, %s81
      %s101 = sphi 0, %s101
      %s103 = sphi 0, %s101
      %s104 = sphi 0, %s103
      %s118 = sphi 0, %s104
      %s122 = sphi 0, %s122
      %s124 = sphi 0, %s122
      %s125 = sphi 0, %s124
      %s139 = sphi 0, %s125
      %s143 = sphi 0, %s143
      %s145 = sphi 0, %s143
      %s146 = sphi 0, %s145
      %s160 = sphi 0, %s146
      %s164 = sphi 0, %s164
      %s166 = sphi 0, %s164
      %s167 = sphi 0, %s166
      %s181 = sphi 0, %s167
      %s187 = sphi 0, %s189
      %s190 = sphi 0, %s187
      %s191 = sphi 0, %s190
      %s207 = sphi 0, %s191
    $region4: #{tpu_custom_call.1} parent=1 // loop_header_branch
      %30 = sbr.rel (%p28) target = $region8
    $region5: #{tpu_custom_call.1} parent=1 // loop_body
      %s32 = ssub.s32 %s27, 1
      %s33 = ssub.s32 %s27, 2
      %s40 = sadd.s32 1, %s35
      %p41 = scmp.ge.s32.totalorder %s40, 2
      %s42 = scalar_select %p41, 0, %s40
      %s43 = sadd.s32 1, %s34
      %s44 = scalar_select %p41, %s43, %s34
      %p45 = scmp.ge.s32.totalorder %s44, 2
      %s46 = scalar_select %p45, 0, %s44
      %s47 = ssub.s32 %s34, %s46
      %s48 = ssub.s32 %s35, %s42
      %s49 = sor.u32 %s47, %s48
      %p50 = scmp.eq.s32.totalorder %s49, 0
      %s52 = sadd.s32 %s51, 1
      %s53 = scalar_select %p50, %s51, %s52
      %p56 = pneg %p50
      %p57 = scmp.eq.s32.totalorder %s27, 3
      %p58 = por %p56, %p57
      %p59 = scmp.ne.s32.totalorder %s51, %s54
      %p60 = scmp.eq.s32.totalorder %s27, 0
      %p61 = por %p59, %p60
      %p62 = scmp.ne.s32.totalorder %s51, %s54
      %p63 = scmp.eq.s32.totalorder %s32, 3
      %p64 = por %p62, %p63
      %p65 = scmp.ne.s32.totalorder %s54, %s55
      %p66 = scmp.eq.s32.totalorder %s32, 0
      %p67 = por %p65, %p66
      %p68 = scmp.ne.s32.totalorder %s54, %s55
      %p69 = scmp.eq.s32.totalorder %s33, 3
      %p70 = por %p68, %p69
      %p72 = scmp.ne.s32.totalorder %s55, %s71
      %p73 = scmp.eq.s32.totalorder %s33, 0
      %p74 = por %p72, %p73
      %s75 = ssub.s32 %s35, %s42
      %p76 = scmp.eq.s32.totalorder %s75, 0
      %s78 = sadd.s32 %s77, 1
      %s79 = scalar_select %p76, %s77, %s78
      %p82 = pneg %p76
      %p83 = scmp.eq.s32.totalorder %s27, 3
      %p84 = por %p82, %p83
      %p85 = scmp.ne.s32.totalorder %s77, %s80
      %p86 = scmp.eq.s32.totalorder %s27, 0
      %p87 = por %p85, %p86
      %p88 = scmp.ne.s32.totalorder %s77, %s80
      %p89 = scmp.eq.s32.totalorder %s32, 3
      %p90 = por %p88, %p89
      %p91 = scmp.ne.s32.totalorder %s80, %s81
      %p92 = scmp.eq.s32.totalorder %s32, 0
      %p93 = por %p91, %p92
      %p94 = scmp.ne.s32.totalorder %s80, %s81
      %p95 = scmp.eq.s32.totalorder %s33, 3
      %p96 = por %p94, %p95
      %p98 = scmp.ne.s32.totalorder %s81, %s97
      %p99 = scmp.eq.s32.totalorder %s33, 0
      %p100 = por %p98, %p99
      %s102 = sadd.s32 %s101, 1
      %p105 = scmp.eq.s32.totalorder %s27, 3
      %p106 = scmp.ne.s32.totalorder %s101, %s103
      %p107 = scmp.eq.s32.totalorder %s27, 0
      %p108 = por %p106, %p107
      %p109 = scmp.ne.s32.totalorder %s101, %s103
      %p110 = scmp.eq.s32.totalorder %s32, 3
      %p111 = por %p109, %p110
      %p112 = scmp.ne.s32.totalorder %s103, %s104
      %p113 = scmp.eq.s32.totalorder %s32, 0
      %p114 = por %p112, %p113
      %p115 = scmp.ne.s32.totalorder %s103, %s104
      %p116 = scmp.eq.s32.totalorder %s33, 3
      %p117 = por %p115, %p116
      %p119 = scmp.ne.s32.totalorder %s104, %s118
      %p120 = scmp.eq.s32.totalorder %s33, 0
      %p121 = por %p119, %p120
      %s123 = sadd.s32 %s122, 1
      %p126 = scmp.eq.s32.totalorder %s27, 3
      %p127 = scmp.ne.s32.totalorder %s122, %s124
      %p128 = scmp.eq.s32.totalorder %s27, 0
      %p129 = por %p127, %p128
      %p130 = scmp.ne.s32.totalorder %s122, %s124
      %p131 = scmp.eq.s32.totalorder %s32, 3
      %p132 = por %p130, %p131
      %p133 = scmp.ne.s32.totalorder %s124, %s125
      %p134 = scmp.eq.s32.totalorder %s32, 0
      %p135 = por %p133, %p134
      %p136 = scmp.ne.s32.totalorder %s124, %s125
      %p137 = scmp.eq.s32.totalorder %s33, 3
      %p138 = por %p136, %p137
      %p140 = scmp.ne.s32.totalorder %s125, %s139
      %p141 = scmp.eq.s32.totalorder %s33, 0
      %p142 = por %p140, %p141
      %s144 = sadd.s32 %s143, 1
      %p147 = scmp.eq.s32.totalorder %s27, 3
      %p148 = scmp.ne.s32.totalorder %s143, %s145
      %p149 = scmp.eq.s32.totalorder %s27, 0
      %p150 = por %p148, %p149
      %p151 = scmp.ne.s32.totalorder %s143, %s145
      %p152 = scmp.eq.s32.totalorder %s32, 3
      %p153 = por %p151, %p152
      %p154 = scmp.ne.s32.totalorder %s145, %s146
      %p155 = scmp.eq.s32.totalorder %s32, 0
      %p156 = por %p154, %p155
      %p157 = scmp.ne.s32.totalorder %s145, %s146
      %p158 = scmp.eq.s32.totalorder %s33, 3
      %p159 = por %p157, %p158
      %p161 = scmp.ne.s32.totalorder %s146, %s160
      %p162 = scmp.eq.s32.totalorder %s33, 0
      %p163 = por %p161, %p162
      %s165 = sadd.s32 %s164, 1
      %p168 = scmp.eq.s32.totalorder %s27, 3
      %p169 = scmp.ne.s32.totalorder %s164, %s166
      %p170 = scmp.eq.s32.totalorder %s27, 0
      %p171 = por %p169, %p170
      %p172 = scmp.ne.s32.totalorder %s164, %s166
      %p173 = scmp.eq.s32.totalorder %s32, 3
      %p174 = por %p172, %p173
      %p175 = scmp.ne.s32.totalorder %s166, %s167
      %p176 = scmp.eq.s32.totalorder %s32, 0
      %p177 = por %p175, %p176
      %p178 = scmp.ne.s32.totalorder %s166, %s167
      %p179 = scmp.eq.s32.totalorder %s33, 3
      %p180 = por %p178, %p179
      %p182 = scmp.ne.s32.totalorder %s167, %s181
      %p183 = scmp.eq.s32.totalorder %s33, 0
      %p184 = por %p182, %p183
      %s185 = ssub.s32 %s34, %s46
      %p186 = scmp.eq.s32.totalorder %s185, 0
      %s188 = sadd.s32 %s187, 1
      %s189 = scalar_select %p186, %s187, %s188
      %p192 = pneg %p186
      %p193 = scmp.eq.s32.totalorder %s27, 3
      %p194 = por %p192, %p193
      %p195 = scmp.ne.s32.totalorder %s187, %s190
      %p196 = scmp.eq.s32.totalorder %s27, 0
      %p197 = por %p195, %p196
      %p198 = scmp.ne.s32.totalorder %s187, %s190
      %p199 = scmp.eq.s32.totalorder %s32, 3
      %p200 = por %p198, %p199
      %p201 = scmp.ne.s32.totalorder %s190, %s191
      %p202 = scmp.eq.s32.totalorder %s32, 0
      %p203 = por %p201, %p202
      %p204 = scmp.ne.s32.totalorder %s190, %s191
      %p205 = scmp.eq.s32.totalorder %s33, 3
      %p206 = por %p204, %p205
      %p208 = scmp.ne.s32.totalorder %s191, %s207
      %p209 = scmp.eq.s32.totalorder %s33, 0
      %p210 = por %p208, %p209
      %p211 = scmp.le.s32.totalorder 1, %s27
      %p212 = scmp.lt.s32.totalorder %s27, 5
      %p213 = pnand %p211, %p212
      %p214 = pneg %p213
      // Predicated region
      $region9: #{tpu_custom_call.1} parent=5 // pred_check
        _
      $region10: #{tpu_custom_call.1} parent=5 // pred_check_branch
        %216 = sbr.rel (%p213) target = $region12
      $region11: #{tpu_custom_call.1} parent=5 // pred_region
        %s217 = ssub.s32 %s27, 1
        // Predicated region
        $region13: #{tpu_custom_call.1} parent=11 // pred_check
          %p218 = pneg %p114
        $region14: #{tpu_custom_call.1} parent=11 // pred_check_branch
          %220 = sbr.rel (%p218) target = $region16
        $region15: #{tpu_custom_call.1} parent=11 // pred_region
          %s222 = ssub.s32 1024, 1024
          %223 = vsyncadd [#allocation9], %s222
          %s224 = sshll.u32 [#allocation10], 4
          %s225 = int_to_ptr.vmem [resolvable:$true] %s224
          %230 = dma.hbm_to_vmem [thread:$0]  %s3, 1024, %s225, [#allocation9], 64, 64, 4
        $region16: #{tpu_custom_call.1} parent=11 // pred_fallthru
          _
        // Predicated region
        $region17: #{tpu_custom_call.1} parent=11 // pred_check
          %p231 = pneg %p135
        $region18: #{tpu_custom_call.1} parent=11 // pred_check_branch
          %233 = sbr.rel (%p231) target = $region20
        $region19: #{tpu_custom_call.1} parent=11 // pred_region
          _
        $region20: #{tpu_custom_call.1} parent=11 // pred_fallthru
          _
        // Predicated region
        $region21: #{tpu_custom_call.1} parent=11 // pred_check
          %p234 = pneg %p156
        $region22: #{tpu_custom_call.1} parent=11 // pred_check_branch
          %236 = sbr.rel (%p234) target = $region24
        $region23: #{tpu_custom_call.1} parent=11 // pred_region
          %s238 = ssub.s32 1024, 1024
          %239 = vsyncadd [#allocation12], %s238
          %s240 = sshll.u32 [#allocation11], 4
          %s241 = int_to_ptr.vmem [resolvable:$true] %s240
          %246 = dma.hbm_to_vmem [thread:$0]  %s5, 1024, %s241, [#allocation12], 64, 64, 4
        $region24: #{tpu_custom_call.1} parent=11 // pred_fallthru
          _
        // Predicated region
        $region25: #{tpu_custom_call.1} parent=11 // pred_check
          %p247 = pneg %p177
        $region26: #{tpu_custom_call.1} parent=11 // pred_check_branch
          %249 = sbr.rel (%p247) target = $region28
        $region27: #{tpu_custom_call.1} parent=11 // pred_region
          _
        $region28: #{tpu_custom_call.1} parent=11 // pred_fallthru
          _
      $region12: #{tpu_custom_call.1} parent=5 // pred_fallthru
        _
      %p250 = scmp.lt.s32.totalorder %s27, 4
      // Predicated region
      $region29: #{tpu_custom_call.1} parent=5 // pred_check
        %p251 = pneg %p250
      $region30: #{tpu_custom_call.1} parent=5 // pred_check_branch
        %253 = sbr.rel (%p251) target = $region32
      $region31: #{tpu_custom_call.1} parent=5 // pred_region
        // Predicated region
        $region33: #{tpu_custom_call.1} parent=31 // pred_check
          %p254 = pneg %p61
        $region34: #{tpu_custom_call.1} parent=31 // pred_check_branch
          %256 = sbr.rel (%p254) target = $region36
        $region35: #{tpu_custom_call.1} parent=31 // pred_region
          %s257 = sand.u32 %s51, 1
          %s258 = scalar_lea.sflag [#allocation6], %s257
          %s259 = sand.u32 %s51, 1
          %s260 = smul.addr %s259, 64
          %s261 = scalar_lea.vmem [#allocation5], %s260
          %s262 = smul.u32 16, %s34
          %s264 = ssub.s32 1024, 1024
          %265 = vsyncadd %s258, %s264
          %s266 = smul.addr %s262, 2
          %s267 = sadd.s32 %s35, %s266
          %s268 = smul.addr %s267, 64
          %s269 = scalar_lea.hbm %s1, %s268
          %s270 = sshll.u32 %s261, 4
          %s271 = int_to_ptr.vmem [resolvable:$true] %s270
          %276 = dma.hbm_to_vmem [thread:$0]  %s269, 1024, %s271, %s258, 128, 64, 4
        $region36: #{tpu_custom_call.1} parent=31 // pred_fallthru
          _
        // Predicated region
        $region37: #{tpu_custom_call.1} parent=31 // pred_check
          %p277 = pneg %p87
        $region38: #{tpu_custom_call.1} parent=31 // pred_check_branch
          %279 = sbr.rel (%p277) target = $region40
        $region39: #{tpu_custom_call.1} parent=31 // pred_region
          %s280 = sand.u32 %s27, 1
          %s281 = scalar_lea.sflag [#allocation9], %s280
          %s282 = sand.u32 %s77, 1
          %s283 = smul.addr %s282, 64
          %s284 = scalar_lea.vmem [#allocation8], %s283
          %s285 = smul.u32 16, %s35
          %s287 = ssub.s32 1024, 1024
          %288 = vsyncadd %s281, %s287
          %s289 = smul.addr %s285, 64
          %s290 = scalar_lea.hbm %s2, %s289
          %s291 = sshll.u32 %s284, 4
          %s292 = int_to_ptr.vmem [resolvable:$true] %s291
          %297 = dma.hbm_to_vmem [thread:$0]  %s290, 1024, %s292, %s281, 64, 64, 4
        $region40: #{tpu_custom_call.1} parent=31 // pred_fallthru
          _
      $region32: #{tpu_custom_call.1} parent=5 // pred_fallthru
        _
      %p298 = scmp.le.s32.totalorder 1, %s27
      %p299 = scmp.lt.s32.totalorder %s27, 5
      %p300 = pnand %p298, %p299
      %p301 = pneg %p300
      // Predicated region
      $region41: #{tpu_custom_call.1} parent=5 // pred_check
        _
      $region42: #{tpu_custom_call.1} parent=5 // pred_check_branch
        %303 = sbr.rel (%p300) target = $region44
      $region43: #{tpu_custom_call.1} parent=5 // pred_region
        %s304 = ssub.s32 %s27, 1
        %s305 = sand.u32 %s54, 1
        %s306 = scalar_lea.sflag [#allocation6], %s305
        %s307 = sand.u32 %s54, 1
        %s308 = smul.addr %s307, 64
        %s309 = scalar_lea.vmem [#allocation5], %s308
        // Predicated region
        $region45: #{tpu_custom_call.1} parent=43 // pred_check
          %p310 = pneg %p67
        $region46: #{tpu_custom_call.1} parent=43 // pred_check_branch
          %312 = sbr.rel (%p310) target = $region48
        $region47: #{tpu_custom_call.1} parent=43 // pred_region
          %313 = dma.done %s306, 1024
        $region48: #{tpu_custom_call.1} parent=43 // pred_fallthru
          _
        %s314 = sand.u32 %s32, 1
        %s315 = scalar_lea.sflag [#allocation9], %s314
        %s316 = sand.u32 %s80, 1
        %s317 = smul.addr %s316, 64
        %s318 = scalar_lea.vmem [#allocation8], %s317
        // Predicated region
        $region49: #{tpu_custom_call.1} parent=43 // pred_check
          %p319 = pneg %p93
        $region50: #{tpu_custom_call.1} parent=43 // pred_check_branch
          %321 = sbr.rel (%p319) target = $region52
        $region51: #{tpu_custom_call.1} parent=43 // pred_region
          %322 = dma.done %s315, 1024
        $region52: #{tpu_custom_call.1} parent=43 // pred_fallthru
          _
        // Predicated region
        $region53: #{tpu_custom_call.1} parent=43 // pred_check
          %p323 = pneg %p114
        $region54: #{tpu_custom_call.1} parent=43 // pred_check_branch
          %325 = sbr.rel (%p323) target = $region56
        $region55: #{tpu_custom_call.1} parent=43 // pred_region
          %326 = dma.done [#allocation9], 1024
        $region56: #{tpu_custom_call.1} parent=43 // pred_fallthru
          _
        // Predicated region
        $region57: #{tpu_custom_call.1} parent=43 // pred_check
          %p327 = pneg %p156
        $region58: #{tpu_custom_call.1} parent=43 // pred_check_branch
          %329 = sbr.rel (%p327) target = $region60
        $region59: #{tpu_custom_call.1} parent=43 // pred_region
          %330 = dma.done [#allocation12], 1024
        $region60: #{tpu_custom_call.1} parent=43 // pred_fallthru
          _
        %s331 = sand.u32 %s54, 1
        %s332 = scalar_lea.sflag [#allocation6], %s331
        %s333 = sand.u32 %s54, 1
        %s334 = smul.addr %s333, 64
        %s335 = scalar_lea.vmem [#allocation5], %s334
        %p336 = pneg %p67
        %p337 = pneg %p64
        %s338 = sand.u32 %s32, 1
        %s339 = scalar_lea.sflag [#allocation9], %s338
        %s340 = sand.u32 %s80, 1
        %s341 = smul.addr %s340, 64
        %s342 = scalar_lea.vmem [#allocation8], %s341
        %p343 = pneg %p93
        %p344 = pneg %p90
        %p345 = pneg %p114
        %p346 = pneg %p111
        %p347 = pneg %p135
        %p348 = pneg %p132
        %p349 = pneg %p156
        %p350 = pneg %p153
        %p351 = pneg %p177
        %p352 = pneg %p174
        %p353 = pneg %p203
        %p354 = pneg %p200
        %s355 = sand.u32 %s190, 1
        %s356 = scalar_lea.sflag [#allocation7], %s355
        %s357 = sand.u32 %s190, 1
        %s358 = smul.addr %s357, 128
        %s359 = scalar_lea.vmem [#allocation13], %s358
        %s360 = smul.u32 16, %s36
        %s361 = smul.u32 16, %s37
        %s362 = smul.u32 16, %s36
        %p364 = scmp.eq.s32.totalorder %s37, 0
        // Predicated region
        $region61: #{tpu_custom_call.1} parent=43 // pred_check
          %p365 = pneg %p364
        $region62: #{tpu_custom_call.1} parent=43 // pred_check_branch
          %367 = sbr.rel (%p365) target = $region64
        $region63: #{tpu_custom_call.1} parent=43 // pred_region
          %368 = vst [vmem:[#allocation2] sm:$0xff] 0.0
          %369 = vst [vmem:[#allocation2 + $0x8] sm:$0xff] 0.0
          %370 = vst [vmem:[#allocation2 + $0x10] sm:$0xff] 0.0
          %371 = vst [vmem:[#allocation2 + $0x18] sm:$0xff] 0.0
          %372 = vst [vmem:[#allocation2 + $0x20] sm:$0xff] 0.0
          %373 = vst [vmem:[#allocation2 + $0x28] sm:$0xff] 0.0
          %374 = vst [vmem:[#allocation2 + $0x30] sm:$0xff] 0.0
          %375 = vst [vmem:[#allocation2 + $0x38] sm:$0xff] 0.0
          %376 = vst [vmem:[#allocation2 + $0x40] sm:$0xff] 0.0
          %377 = vst [vmem:[#allocation2 + $0x48] sm:$0xff] 0.0
          %378 = vst [vmem:[#allocation2 + $0x50] sm:$0xff] 0.0
          %379 = vst [vmem:[#allocation2 + $0x58] sm:$0xff] 0.0
          %380 = vst [vmem:[#allocation2 + $0x60] sm:$0xff] 0.0
          %381 = vst [vmem:[#allocation2 + $0x68] sm:$0xff] 0.0
          %382 = vst [vmem:[#allocation2 + $0x70] sm:$0xff] 0.0
          %383 = vst [vmem:[#allocation2 + $0x78] sm:$0xff] 0.0
        $region64: #{tpu_custom_call.1} parent=43 // pred_fallthru
          _
        %s384 = sshra.s32 %s37, 7
        %s385 = sand.u32 %s37, 127
        %s386 = sadd.s32 %s384, %s36
        %s387 = smul.u32 %s386, 128
        %s388 = sshra.s32 %s37, 7
        %s389 = sand.u32 %s37, 127
        %s390 = sadd.s32 %s387, %s389
        %s391 = sld [smem:[#allocation4 + %s390]]
        %p392 = scmp.ne.s32.totalorder %s391, 0
        // Predicated region
        $region65: #{tpu_custom_call.1} parent=43 // pred_check
          %p393 = pneg %p392
        $region66: #{tpu_custom_call.1} parent=43 // pred_check_branch
          %395 = sbr.rel (%p393) target = $region68
        $region67: #{tpu_custom_call.1} parent=43 // pred_region
          %v396 = vld [vmem:[#allocation2] sm:$0xff]
          %v397 = vld [vmem:[#allocation2 + $0x8] sm:$0xff]
          %v398 = vld [vmem:[#allocation2 + $0x10] sm:$0xff]
          %v399 = vld [vmem:[#allocation2 + $0x18] sm:$0xff]
          %v400 = vld [vmem:[#allocation2 + $0x20] sm:$0xff]
          %v401 = vld [vmem:[#allocation2 + $0x28] sm:$0xff]
          %v402 = vld [vmem:[#allocation2 + $0x30] sm:$0xff]
          %v403 = vld [vmem:[#allocation2 + $0x38] sm:$0xff]
          %v404 = vld [vmem:[#allocation2 + $0x40] sm:$0xff]
          %v405 = vld [vmem:[#allocation2 + $0x48] sm:$0xff]
          %v406 = vld [vmem:[#allocation2 + $0x50] sm:$0xff]
          %v407 = vld [vmem:[#allocation2 + $0x58] sm:$0xff]
          %v408 = vld [vmem:[#allocation2 + $0x60] sm:$0xff]
          %v409 = vld [vmem:[#allocation2 + $0x68] sm:$0xff]
          %v410 = vld [vmem:[#allocation2 + $0x70] sm:$0xff]
          %v411 = vld [vmem:[#allocation2 + $0x78] sm:$0xff]
          %v412 = vld [vmem:[%s309] sm:$0xf]
          %v413 = vld [vmem:[%s309 + $0x4] sm:$0xf]
          %v414 = vld [vmem:[%s309 + $0x8] sm:$0xf]
          %v415 = vld [vmem:[%s309 + $0xc] sm:$0xf]
          %v416 = vld [vmem:[%s309 + $0x10] sm:$0xf]
          %v417 = vld [vmem:[%s309 + $0x14] sm:$0xf]
          %v418 = vld [vmem:[%s309 + $0x18] sm:$0xf]
          %v419 = vld [vmem:[%s309 + $0x1c] sm:$0xf]
          %v420 = vld [vmem:[%s309 + $0x20] sm:$0xf]
          %v421 = vld [vmem:[%s309 + $0x24] sm:$0xf]
          %v422 = vld [vmem:[%s309 + $0x28] sm:$0xf]
          %v423 = vld [vmem:[%s309 + $0x2c] sm:$0xf]
          %v424 = vld [vmem:[%s309 + $0x30] sm:$0xf]
          %v425 = vld [vmem:[%s309 + $0x34] sm:$0xf]
          %v426 = vld [vmem:[%s309 + $0x38] sm:$0xf]
          %v427 = vld [vmem:[%s309 + $0x3c] sm:$0xf]
          %v428 = vld [vmem:[%s318] sm:$0xf]
          %v429 = vld [vmem:[%s318 + $0x4] sm:$0xf]
          %v430 = vld [vmem:[%s318 + $0x8] sm:$0xf]
          %v431 = vld [vmem:[%s318 + $0xc] sm:$0xf]
          %v432 = vld [vmem:[%s318 + $0x10] sm:$0xf]
          %v433 = vld [vmem:[%s318 + $0x14] sm:$0xf]
          %v434 = vld [vmem:[%s318 + $0x18] sm:$0xf]
          %v435 = vld [vmem:[%s318 + $0x1c] sm:$0xf]
          %v436 = vld [vmem:[%s318 + $0x20] sm:$0xf]
          %v437 = vld [vmem:[%s318 + $0x24] sm:$0xf]
          %v438 = vld [vmem:[%s318 + $0x28] sm:$0xf]
          %v439 = vld [vmem:[%s318 + $0x2c] sm:$0xf]
          %v440 = vld [vmem:[%s318 + $0x30] sm:$0xf]
          %v441 = vld [vmem:[%s318 + $0x34] sm:$0xf]
          %v442 = vld [vmem:[%s318 + $0x38] sm:$0xf]
          %v443 = vld [vmem:[%s318 + $0x3c] sm:$0xf]
          %v460 = vunpack.c.l.b16 %v412
          %v461 = vunpack.c.l.b16 %v413
          %v462 = vunpack.c.l.b16 %v414
          %v463 = vunpack.c.l.b16 %v415
          %v464 = vunpack.c.l.b16 %v416
          %v465 = vunpack.c.l.b16 %v417
          %v466 = vunpack.c.l.b16 %v418
          %v467 = vunpack.c.l.b16 %v419
          %v468 = vunpack.c.l.b16 %v420
          %v469 = vunpack.c.l.b16 %v421
          %v470 = vunpack.c.l.b16 %v422
          %v471 = vunpack.c.l.b16 %v423
          %v472 = vunpack.c.l.b16 %v424
          %v473 = vunpack.c.l.b16 %v425
          %v474 = vunpack.c.l.b16 %v426
          %v475 = vunpack.c.l.b16 %v427
          %v476 = vpack.c.b16 %v461, %v460
          %v477 = vpack.c.b16 %v463, %v462
          %v478 = vpack.c.b16 %v465, %v464
          %v479 = vpack.c.b16 %v467, %v466
          %v480 = vpack.c.b16 %v469, %v468
          %v481 = vpack.c.b16 %v471, %v470
          %v482 = vpack.c.b16 %v473, %v472
          %v483 = vpack.c.b16 %v475, %v474
          %v508 = vunpack.c.l.b16 %v428
          %v509 = vunpack.c.l.b16 %v429
          %v510 = vunpack.c.l.b16 %v430
          %v511 = vunpack.c.l.b16 %v431
          %v512 = vunpack.c.l.b16 %v432
          %v513 = vunpack.c.l.b16 %v433
          %v514 = vunpack.c.l.b16 %v434
          %v515 = vunpack.c.l.b16 %v435
          %v516 = vunpack.c.l.b16 %v436
          %v517 = vunpack.c.l.b16 %v437
          %v518 = vunpack.c.l.b16 %v438
          %v519 = vunpack.c.l.b16 %v439
          %v520 = vunpack.c.l.b16 %v440
          %v521 = vunpack.c.l.b16 %v441
          %v522 = vunpack.c.l.b16 %v442
          %v523 = vunpack.c.l.b16 %v443
          %v524 = vpack.c.b16 %v509, %v508
          %v525 = vpack.c.b16 %v511, %v510
          %v526 = vpack.c.b16 %v513, %v512
          %v527 = vpack.c.b16 %v515, %v514
          %v528 = vpack.c.b16 %v517, %v516
          %v529 = vpack.c.b16 %v519, %v518
          %v530 = vpack.c.b16 %v521, %v520
          %v531 = vpack.c.b16 %v523, %v522
          %540 = vmatprep.subr.bf16.mxu0 0
          %541 = vmatpush1.bf16.msra.mxu0 %v524
          %542 = vmatprep.subr.bf16.mxu0 0
          %543 = vmatpush1.bf16.msra.mxu0 %v525
          %544 = vmatprep.subr.bf16.mxu0 0
          %545 = vmatpush1.bf16.msra.mxu0 %v526
          %546 = vmatprep.subr.bf16.mxu0 0
          %547 = vmatpush1.bf16.msra.mxu0 %v527
          %548 = vmatprep.subr.bf16.mxu0 0
          %549 = vmatpush1.bf16.msra.mxu0 %v528
          %550 = vmatprep.subr.bf16.mxu0 0
          %551 = vmatpush1.bf16.msra.mxu0 %v529
          %552 = vmatprep.subr.bf16.mxu0 0
          %553 = vmatpush1.bf16.msra.mxu0 %v530
          %554 = vmatprep.subr.bf16.mxu0 0
          %555 = vmatpush1.bf16.msra.mxu0 %v531
          %556 = vmatprep.subr.bf16.mxu0 0
          %557 = vmatpush1.bf16.msra.mxu0 0
          %558 = vmatprep.subr.bf16.mxu0 0
          %559 = vmatpush1.bf16.msra.mxu0 0
          %560 = vmatprep.subr.bf16.mxu0 0
          %561 = vmatpush1.bf16.msra.mxu0 0
          %562 = vmatprep.subr.bf16.mxu0 0
          %563 = vmatpush1.bf16.msra.mxu0 0
          %564 = vmatprep.subr.bf16.mxu0 0
          %565 = vmatpush1.bf16.msra.mxu0 0
          %566 = vmatprep.subr.bf16.mxu0 0
          %567 = vmatpush1.bf16.msra.mxu0 0
          %568 = vmatprep.subr.bf16.mxu0 0
          %569 = vmatpush1.bf16.msra.mxu0 0
          %570 = vmatprep.subr.bf16.mxu0 0
          %571 = vmatpush1.bf16.msra.mxu0 0
          %572 = vmatprep.mubr.bf16.mxu0 0
          %573 = vmatmul.mubr.bf16.gmra.mrb[0].mxu0 %v476
          %v574 = vpop.f32.mrb[0].mxu0
          %v575 = vadd.f32 0.0, %v574
          %v576 = vpop.f32.mrb[0].mxu0
          %v577 = vpop.f32.mrb[0].mxu0
          %v578 = vadd.f32 0.0, %v577
          %v579 = vpop.f32.mrb[0].mxu0
          %580 = vmatprep.mubr.bf16.mxu0 0
          %581 = vmatmul.mubr.bf16.gmra.mrb[0].mxu0 %v477
          %v582 = vpop.f32.mrb[0].mxu0
          %v583 = vadd.f32 0.0, %v582
          %v584 = vpop.f32.mrb[0].mxu0
          %v585 = vpop.f32.mrb[0].mxu0
          %v586 = vadd.f32 0.0, %v585
          %v587 = vpop.f32.mrb[0].mxu0
          %588 = vmatprep.mubr.bf16.mxu0 0
          %589 = vmatmul.mubr.bf16.gmra.mrb[0].mxu0 %v478
          %v590 = vpop.f32.mrb[0].mxu0
          %v591 = vadd.f32 0.0, %v590
          %v592 = vpop.f32.mrb[0].mxu0
          %v593 = vpop.f32.mrb[0].mxu0
          %v594 = vadd.f32 0.0, %v593
          %v595 = vpop.f32.mrb[0].mxu0
          %596 = vmatprep.mubr.bf16.mxu0 0
          %597 = vmatmul.mubr.bf16.gmra.mrb[0].mxu0 %v479
          %v598 = vpop.f32.mrb[0].mxu0
          %v599 = vadd.f32 0.0, %v598
          %v600 = vpop.f32.mrb[0].mxu0
          %v601 = vpop.f32.mrb[0].mxu0
          %v602 = vadd.f32 0.0, %v601
          %v603 = vpop.f32.mrb[0].mxu0
          %604 = vmatprep.mubr.bf16.mxu0 0
          %605 = vmatmul.mubr.bf16.gmra.mrb[0].mxu0 %v480
          %v606 = vpop.f32.mrb[0].mxu0
          %v607 = vadd.f32 0.0, %v606
          %v608 = vpop.f32.mrb[0].mxu0
          %v609 = vpop.f32.mrb[0].mxu0
          %v610 = vadd.f32 0.0, %v609
          %v611 = vpop.f32.mrb[0].mxu0
          %612 = vmatprep.mubr.bf16.mxu0 0
          %613 = vmatmul.mubr.bf16.gmra.mrb[0].mxu0 %v481
          %v614 = vpop.f32.mrb[0].mxu0
          %v615 = vadd.f32 0.0, %v614
          %v616 = vpop.f32.mrb[0].mxu0
          %v617 = vpop.f32.mrb[0].mxu0
          %v618 = vadd.f32 0.0, %v617
          %v619 = vpop.f32.mrb[0].mxu0
          %620 = vmatprep.mubr.bf16.mxu0 0
          %621 = vmatmul.mubr.bf16.gmra.mrb[0].mxu0 %v482
          %v622 = vpop.f32.mrb[0].mxu0
          %v623 = vadd.f32 0.0, %v622
          %v624 = vpop.f32.mrb[0].mxu0
          %v625 = vpop.f32.mrb[0].mxu0
          %v626 = vadd.f32 0.0, %v625
          %v627 = vpop.f32.mrb[0].mxu0
          %628 = vmatprep.mubr.bf16.mxu0 0
          %629 = vmatmul.mubr.bf16.gmra.mrb[0].mxu0 %v483
          %v630 = vpop.f32.mrb[0].mxu0
          %v631 = vadd.f32 0.0, %v630
          %v632 = vpop.f32.mrb[0].mxu0
          %v633 = vpop.f32.mrb[0].mxu0
          %v634 = vadd.f32 0.0, %v633
          %v635 = vpop.f32.mrb[0].mxu0
          %636 = vdwg.mxu0
          %v637 = vadd.f32 %v396, %v575
          %v638 = vadd.f32 %v397, %v578
          %v639 = vadd.f32 %v398, %v583
          %v640 = vadd.f32 %v399, %v586
          %v641 = vadd.f32 %v400, %v591
          %v642 = vadd.f32 %v401, %v594
          %v643 = vadd.f32 %v402, %v599
          %v644 = vadd.f32 %v403, %v602
          %v645 = vadd.f32 %v404, %v607
          %v646 = vadd.f32 %v405, %v610
          %v647 = vadd.f32 %v406, %v615
          %v648 = vadd.f32 %v407, %v618
          %v649 = vadd.f32 %v408, %v623
          %v650 = vadd.f32 %v409, %v626
          %v651 = vadd.f32 %v410, %v631
          %v652 = vadd.f32 %v411, %v634
          %653 = vst [vmem:[#allocation2] sm:$0xff] %v637
          %654 = vst [vmem:[#allocation2 + $0x8] sm:$0xff] %v638
          %655 = vst [vmem:[#allocation2 + $0x10] sm:$0xff] %v639
          %656 = vst [vmem:[#allocation2 + $0x18] sm:$0xff] %v640
          %657 = vst [vmem:[#allocation2 + $0x20] sm:$0xff] %v641
          %658 = vst [vmem:[#allocation2 + $0x28] sm:$0xff] %v642
          %659 = vst [vmem:[#allocation2 + $0x30] sm:$0xff] %v643
          %660 = vst [vmem:[#allocation2 + $0x38] sm:$0xff] %v644
          %661 = vst [vmem:[#allocation2 + $0x40] sm:$0xff] %v645
          %662 = vst [vmem:[#allocation2 + $0x48] sm:$0xff] %v646
          %663 = vst [vmem:[#allocation2 + $0x50] sm:$0xff] %v647
          %664 = vst [vmem:[#allocation2 + $0x58] sm:$0xff] %v648
          %665 = vst [vmem:[#allocation2 + $0x60] sm:$0xff] %v649
          %666 = vst [vmem:[#allocation2 + $0x68] sm:$0xff] %v650
          %667 = vst [vmem:[#allocation2 + $0x70] sm:$0xff] %v651
          %668 = vst [vmem:[#allocation2 + $0x78] sm:$0xff] %v652
        $region68: #{tpu_custom_call.1} parent=43 // pred_fallthru
          _
        %p669 = scmp.eq.s32.totalorder %s37, 1
        // Predicated region
        $region69: #{tpu_custom_call.1} parent=43 // pred_check
          %p670 = pneg %p669
        $region70: #{tpu_custom_call.1} parent=43 // pred_check_branch
          %672 = sbr.rel (%p670) target = $region72
        $region71: #{tpu_custom_call.1} parent=43 // pred_region
          %v673 = vld [vmem:[#allocation2] sm:$0xff]
          %v674 = vld [vmem:[#allocation2 + $0x8] sm:$0xff]
          %v675 = vld [vmem:[#allocation2 + $0x10] sm:$0xff]
          %v676 = vld [vmem:[#allocation2 + $0x18] sm:$0xff]
          %v677 = vld [vmem:[#allocation2 + $0x20] sm:$0xff]
          %v678 = vld [vmem:[#allocation2 + $0x28] sm:$0xff]
          %v679 = vld [vmem:[#allocation2 + $0x30] sm:$0xff]
          %v680 = vld [vmem:[#allocation2 + $0x38] sm:$0xff]
          %v681 = vld [vmem:[#allocation2 + $0x40] sm:$0xff]
          %v682 = vld [vmem:[#allocation2 + $0x48] sm:$0xff]
          %v683 = vld [vmem:[#allocation2 + $0x50] sm:$0xff]
          %v684 = vld [vmem:[#allocation2 + $0x58] sm:$0xff]
          %v685 = vld [vmem:[#allocation2 + $0x60] sm:$0xff]
          %v686 = vld [vmem:[#allocation2 + $0x68] sm:$0xff]
          %v687 = vld [vmem:[#allocation2 + $0x70] sm:$0xff]
          %v688 = vld [vmem:[#allocation2 + $0x78] sm:$0xff]
          %v689 = vpack.c.bf16 %v674, %v673
          %v690 = vpack.c.bf16 %v676, %v675
          %v691 = vpack.c.bf16 %v678, %v677
          %v692 = vpack.c.bf16 %v680, %v679
          %v693 = vpack.c.bf16 %v682, %v681
          %v694 = vpack.c.bf16 %v684, %v683
          %v695 = vpack.c.bf16 %v686, %v685
          %v696 = vpack.c.bf16 %v688, %v687
          %v697 = vld [vmem:[#allocation10] sm:$0xf]
          %v698 = vld [vmem:[#allocation10 + $0x4] sm:$0xf]
          %v699 = vld [vmem:[#allocation10 + $0x8] sm:$0xf]
          %v700 = vld [vmem:[#allocation10 + $0xc] sm:$0xf]
          %v701 = vld [vmem:[#allocation10 + $0x10] sm:$0xf]
          %v702 = vld [vmem:[#allocation10 + $0x14] sm:$0xf]
          %v703 = vld [vmem:[#allocation10 + $0x18] sm:$0xf]
          %v704 = vld [vmem:[#allocation10 + $0x1c] sm:$0xf]
          %v705 = vld [vmem:[#allocation10 + $0x20] sm:$0xf]
          %v706 = vld [vmem:[#allocation10 + $0x24] sm:$0xf]
          %v707 = vld [vmem:[#allocation10 + $0x28] sm:$0xf]
          %v708 = vld [vmem:[#allocation10 + $0x2c] sm:$0xf]
          %v709 = vld [vmem:[#allocation10 + $0x30] sm:$0xf]
          %v710 = vld [vmem:[#allocation10 + $0x34] sm:$0xf]
          %v711 = vld [vmem:[#allocation10 + $0x38] sm:$0xf]
          %v712 = vld [vmem:[#allocation10 + $0x3c] sm:$0xf]
          %v713 = vld [vmem:[%s4] sm:$0x1]
          %v715 = vlaneseq
          %v716 = vshrl.u32 %v715, 7
          %v717 = vsub.s32 0, %v716
          %v718 = vrot.slane %v713, %v717
          %v736 = vunpack.c.l.b16 %v697
          %v737 = vunpack.c.l.b16 %v698
          %v738 = vunpack.c.l.b16 %v699
          %v739 = vunpack.c.l.b16 %v700
          %v740 = vunpack.c.l.b16 %v701
          %v741 = vunpack.c.l.b16 %v702
          %v742 = vunpack.c.l.b16 %v703
          %v743 = vunpack.c.l.b16 %v704
          %v744 = vunpack.c.l.b16 %v705
          %v745 = vunpack.c.l.b16 %v706
          %v746 = vunpack.c.l.b16 %v707
          %v747 = vunpack.c.l.b16 %v708
          %v748 = vunpack.c.l.b16 %v709
          %v749 = vunpack.c.l.b16 %v710
          %v750 = vunpack.c.l.b16 %v711
          %v751 = vunpack.c.l.b16 %v712
          %v752 = vpack.c.b16 %v737, %v736
          %v753 = vpack.c.b16 %v739, %v738
          %v754 = vpack.c.b16 %v741, %v740
          %v755 = vpack.c.b16 %v743, %v742
          %v756 = vpack.c.b16 %v745, %v744
          %v757 = vpack.c.b16 %v747, %v746
          %v758 = vpack.c.b16 %v749, %v748
          %v759 = vpack.c.b16 %v751, %v750
          %768 = vmatprep.subr.bf16.mxu0 0
          %769 = vmatpush1.bf16.msra.mxu0 %v752
          %770 = vmatprep.subr.bf16.mxu0 0
          %771 = vmatpush1.bf16.msra.mxu0 %v753
          %772 = vmatprep.subr.bf16.mxu0 0
          %773 = vmatpush1.bf16.msra.mxu0 %v754
          %774 = vmatprep.subr.bf16.mxu0 0
          %775 = vmatpush1.bf16.msra.mxu0 %v755
          %776 = vmatprep.subr.bf16.mxu0 0
          %777 = vmatpush1.bf16.msra.mxu0 %v756
          %778 = vmatprep.subr.bf16.mxu0 0
          %779 = vmatpush1.bf16.msra.mxu0 %v757
          %780 = vmatprep.subr.bf16.mxu0 0
          %781 = vmatpush1.bf16.msra.mxu0 %v758
          %782 = vmatprep.subr.bf16.mxu0 0
          %783 = vmatpush1.bf16.msra.mxu0 %v759
          %784 = vmatprep.subr.bf16.mxu0 0
          %785 = vmatpush1.bf16.msra.mxu0 0
          %786 = vmatprep.subr.bf16.mxu0 0
          %787 = vmatpush1.bf16.msra.mxu0 0
          %788 = vmatprep.subr.bf16.mxu0 0
          %789 = vmatpush1.bf16.msra.mxu0 0
          %790 = vmatprep.subr.bf16.mxu0 0
          %791 = vmatpush1.bf16.msra.mxu0 0
          %792 = vmatprep.subr.bf16.mxu0 0
          %793 = vmatpush1.bf16.msra.mxu0 0
          %794 = vmatprep.subr.bf16.mxu0 0
          %795 = vmatpush1.bf16.msra.mxu0 0
          %796 = vmatprep.subr.bf16.mxu0 0
          %797 = vmatpush1.bf16.msra.mxu0 0
          %798 = vmatprep.subr.bf16.mxu0 0
          %799 = vmatpush1.bf16.msra.mxu0 0
          %800 = vmatprep.mubr.bf16.mxu0 0
          %801 = vmatmul.mubr.bf16.gmra.mrb[0].mxu0 %v689
          %v802 = vpop.f32.mrb[0].mxu0
          %v803 = vadd.f32 %v718, %v802
          %v804 = vpop.f32.mrb[0].mxu0
          %v805 = vpop.f32.mrb[0].mxu0
          %v806 = vadd.f32 %v718, %v805
          %v807 = vpop.f32.mrb[0].mxu0
          %808 = vmatprep.mubr.bf16.mxu0 0
          %809 = vmatmul.mubr.bf16.gmra.mrb[0].mxu0 %v690
          %v810 = vpop.f32.mrb[0].mxu0
          %v811 = vadd.f32 %v718, %v810
          %v812 = vpop.f32.mrb[0].mxu0
          %v813 = vpop.f32.mrb[0].mxu0
          %v814 = vadd.f32 %v718, %v813
          %v815 = vpop.f32.mrb[0].mxu0
          %816 = vmatprep.mubr.bf16.mxu0 0
          %817 = vmatmul.mubr.bf16.gmra.mrb[0].mxu0 %v691
          %v818 = vpop.f32.mrb[0].mxu0
          %v819 = vadd.f32 %v718, %v818
          %v820 = vpop.f32.mrb[0].mxu0
          %v821 = vpop.f32.mrb[0].mxu0
          %v822 = vadd.f32 %v718, %v821
          %v823 = vpop.f32.mrb[0].mxu0
          %824 = vmatprep.mubr.bf16.mxu0 0
          %825 = vmatmul.mubr.bf16.gmra.mrb[0].mxu0 %v692
          %v826 = vpop.f32.mrb[0].mxu0
          %v827 = vadd.f32 %v718, %v826
          %v828 = vpop.f32.mrb[0].mxu0
          %v829 = vpop.f32.mrb[0].mxu0
          %v830 = vadd.f32 %v718, %v829
          %v831 = vpop.f32.mrb[0].mxu0
          %832 = vmatprep.mubr.bf16.mxu0 0
          %833 = vmatmul.mubr.bf16.gmra.mrb[0].mxu0 %v693
          %v834 = vpop.f32.mrb[0].mxu0
          %v835 = vadd.f32 %v718, %v834
          %v836 = vpop.f32.mrb[0].mxu0
          %v837 = vpop.f32.mrb[0].mxu0
          %v838 = vadd.f32 %v718, %v837
          %v839 = vpop.f32.mrb[0].mxu0
          %840 = vmatprep.mubr.bf16.mxu0 0
          %841 = vmatmul.mubr.bf16.gmra.mrb[0].mxu0 %v694
          %v842 = vpop.f32.mrb[0].mxu0
          %v843 = vadd.f32 %v718, %v842
          %v844 = vpop.f32.mrb[0].mxu0
          %v845 = vpop.f32.mrb[0].mxu0
          %v846 = vadd.f32 %v718, %v845
          %v847 = vpop.f32.mrb[0].mxu0
          %848 = vmatprep.mubr.bf16.mxu0 0
          %849 = vmatmul.mubr.bf16.gmra.mrb[0].mxu0 %v695
          %v850 = vpop.f32.mrb[0].mxu0
          %v851 = vadd.f32 %v718, %v850
          %v852 = vpop.f32.mrb[0].mxu0
          %v853 = vpop.f32.mrb[0].mxu0
          %v854 = vadd.f32 %v718, %v853
          %v855 = vpop.f32.mrb[0].mxu0
          %856 = vmatprep.mubr.bf16.mxu0 0
          %857 = vmatmul.mubr.bf16.gmra.mrb[0].mxu0 %v696
          %v858 = vpop.f32.mrb[0].mxu0
          %v859 = vadd.f32 %v718, %v858
          %v860 = vpop.f32.mrb[0].mxu0
          %v861 = vpop.f32.mrb[0].mxu0
          %v862 = vadd.f32 %v718, %v861
          %v863 = vpop.f32.mrb[0].mxu0
          %864 = vdwg.mxu0
          %v865 = vmax.f32 %v803, 0.0
          %v866 = vmax.f32 %v806, 0.0
          %v867 = vmax.f32 %v811, 0.0
          %v868 = vmax.f32 %v814, 0.0
          %v869 = vmax.f32 %v819, 0.0
          %v870 = vmax.f32 %v822, 0.0
          %v871 = vmax.f32 %v827, 0.0
          %v872 = vmax.f32 %v830, 0.0
          %v873 = vmax.f32 %v835, 0.0
          %v874 = vmax.f32 %v838, 0.0
          %v875 = vmax.f32 %v843, 0.0
          %v876 = vmax.f32 %v846, 0.0
          %v877 = vmax.f32 %v851, 0.0
          %v878 = vmax.f32 %v854, 0.0
          %v879 = vmax.f32 %v859, 0.0
          %v880 = vmax.f32 %v862, 0.0
          %v881 = vpack.c.bf16 %v866, %v865
          %v882 = vpack.c.bf16 %v868, %v867
          %v883 = vpack.c.bf16 %v870, %v869
          %v884 = vpack.c.bf16 %v872, %v871
          %v885 = vpack.c.bf16 %v874, %v873
          %v886 = vpack.c.bf16 %v876, %v875
          %v887 = vpack.c.bf16 %v878, %v877
          %v888 = vpack.c.bf16 %v880, %v879
          %v889 = vld [vmem:[#allocation11] sm:$0xf]
          %v890 = vld [vmem:[#allocation11 + $0x4] sm:$0xf]
          %v891 = vld [vmem:[#allocation11 + $0x8] sm:$0xf]
          %v892 = vld [vmem:[#allocation11 + $0xc] sm:$0xf]
          %v893 = vld [vmem:[#allocation11 + $0x10] sm:$0xf]
          %v894 = vld [vmem:[#allocation11 + $0x14] sm:$0xf]
          %v895 = vld [vmem:[#allocation11 + $0x18] sm:$0xf]
          %v896 = vld [vmem:[#allocation11 + $0x1c] sm:$0xf]
          %v897 = vld [vmem:[#allocation11 + $0x20] sm:$0xf]
          %v898 = vld [vmem:[#allocation11 + $0x24] sm:$0xf]
          %v899 = vld [vmem:[#allocation11 + $0x28] sm:$0xf]
          %v900 = vld [vmem:[#allocation11 + $0x2c] sm:$0xf]
          %v901 = vld [vmem:[#allocation11 + $0x30] sm:$0xf]
          %v902 = vld [vmem:[#allocation11 + $0x34] sm:$0xf]
          %v903 = vld [vmem:[#allocation11 + $0x38] sm:$0xf]
          %v904 = vld [vmem:[#allocation11 + $0x3c] sm:$0xf]
          %v905 = vld [vmem:[%s6] sm:$0x1]
          %v907 = vlaneseq
          %v908 = vshrl.u32 %v907, 7
          %v909 = vsub.s32 0, %v908
          %v910 = vrot.slane %v905, %v909
          %v928 = vunpack.c.l.b16 %v889
          %v929 = vunpack.c.l.b16 %v890
          %v930 = vunpack.c.l.b16 %v891
          %v931 = vunpack.c.l.b16 %v892
          %v932 = vunpack.c.l.b16 %v893
          %v933 = vunpack.c.l.b16 %v894
          %v934 = vunpack.c.l.b16 %v895
          %v935 = vunpack.c.l.b16 %v896
          %v936 = vunpack.c.l.b16 %v897
          %v937 = vunpack.c.l.b16 %v898
          %v938 = vunpack.c.l.b16 %v899
          %v939 = vunpack.c.l.b16 %v900
          %v940 = vunpack.c.l.b16 %v901
          %v941 = vunpack.c.l.b16 %v902
          %v942 = vunpack.c.l.b16 %v903
          %v943 = vunpack.c.l.b16 %v904
          %v944 = vpack.c.b16 %v929, %v928
          %v945 = vpack.c.b16 %v931, %v930
          %v946 = vpack.c.b16 %v933, %v932
          %v947 = vpack.c.b16 %v935, %v934
          %v948 = vpack.c.b16 %v937, %v936
          %v949 = vpack.c.b16 %v939, %v938
          %v950 = vpack.c.b16 %v941, %v940
          %v951 = vpack.c.b16 %v943, %v942
          %960 = vmatprep.subr.bf16.mxu0 0
          %961 = vmatpush1.bf16.msra.mxu0 %v944
          %962 = vmatprep.subr.bf16.mxu0 0
          %963 = vmatpush1.bf16.msra.mxu0 %v945
          %964 = vmatprep.subr.bf16.mxu0 0
          %965 = vmatpush1.bf16.msra.mxu0 %v946
          %966 = vmatprep.subr.bf16.mxu0 0
          %967 = vmatpush1.bf16.msra.mxu0 %v947
          %968 = vmatprep.subr.bf16.mxu0 0
          %969 = vmatpush1.bf16.msra.mxu0 %v948
          %970 = vmatprep.subr.bf16.mxu0 0
          %971 = vmatpush1.bf16.msra.mxu0 %v949
          %972 = vmatprep.subr.bf16.mxu0 0
          %973 = vmatpush1.bf16.msra.mxu0 %v950
          %974 = vmatprep.subr.bf16.mxu0 0
          %975 = vmatpush1.bf16.msra.mxu0 %v951
          %976 = vmatprep.subr.bf16.mxu0 0
          %977 = vmatpush1.bf16.msra.mxu0 0
          %978 = vmatprep.subr.bf16.mxu0 0
          %979 = vmatpush1.bf16.msra.mxu0 0
          %980 = vmatprep.subr.bf16.mxu0 0
          %981 = vmatpush1.bf16.msra.mxu0 0
          %982 = vmatprep.subr.bf16.mxu0 0
          %983 = vmatpush1.bf16.msra.mxu0 0
          %984 = vmatprep.subr.bf16.mxu0 0
          %985 = vmatpush1.bf16.msra.mxu0 0
          %986 = vmatprep.subr.bf16.mxu0 0
          %987 = vmatpush1.bf16.msra.mxu0 0
          %988 = vmatprep.subr.bf16.mxu0 0
          %989 = vmatpush1.bf16.msra.mxu0 0
          %990 = vmatprep.subr.bf16.mxu0 0
          %991 = vmatpush1.bf16.msra.mxu0 0
          %992 = vmatprep.mubr.bf16.mxu0 0
          %993 = vmatmul.mubr.bf16.gmra.mrb[0].mxu0 %v881
          %v994 = vpop.f32.mrb[0].mxu0
          %v995 = vadd.f32 %v910, %v994
          %v996 = vpop.f32.mrb[0].mxu0
          %v997 = vpop.f32.mrb[0].mxu0
          %v998 = vadd.f32 %v910, %v997
          %v999 = vpop.f32.mrb[0].mxu0
          %1000 = vmatprep.mubr.bf16.mxu0 0
          %1001 = vmatmul.mubr.bf16.gmra.mrb[0].mxu0 %v882
          %v1002 = vpop.f32.mrb[0].mxu0
          %v1003 = vadd.f32 %v910, %v1002
          %v1004 = vpop.f32.mrb[0].mxu0
          %v1005 = vpop.f32.mrb[0].mxu0
          %v1006 = vadd.f32 %v910, %v1005
          %v1007 = vpop.f32.mrb[0].mxu0
          %1008 = vmatprep.mubr.bf16.mxu0 0
          %1009 = vmatmul.mubr.bf16.gmra.mrb[0].mxu0 %v883
          %v1010 = vpop.f32.mrb[0].mxu0
          %v1011 = vadd.f32 %v910, %v1010
          %v1012 = vpop.f32.mrb[0].mxu0
          %v1013 = vpop.f32.mrb[0].mxu0
          %v1014 = vadd.f32 %v910, %v1013
          %v1015 = vpop.f32.mrb[0].mxu0
          %1016 = vmatprep.mubr.bf16.mxu0 0
          %1017 = vmatmul.mubr.bf16.gmra.mrb[0].mxu0 %v884
          %v1018 = vpop.f32.mrb[0].mxu0
          %v1019 = vadd.f32 %v910, %v1018
          %v1020 = vpop.f32.mrb[0].mxu0
          %v1021 = vpop.f32.mrb[0].mxu0
          %v1022 = vadd.f32 %v910, %v1021
          %v1023 = vpop.f32.mrb[0].mxu0
          %1024 = vmatprep.mubr.bf16.mxu0 0
          %1025 = vmatmul.mubr.bf16.gmra.mrb[0].mxu0 %v885
          %v1026 = vpop.f32.mrb[0].mxu0
          %v1027 = vadd.f32 %v910, %v1026
          %v1028 = vpop.f32.mrb[0].mxu0
          %v1029 = vpop.f32.mrb[0].mxu0
          %v1030 = vadd.f32 %v910, %v1029
          %v1031 = vpop.f32.mrb[0].mxu0
          %1032 = vmatprep.mubr.bf16.mxu0 0
          %1033 = vmatmul.mubr.bf16.gmra.mrb[0].mxu0 %v886
          %v1034 = vpop.f32.mrb[0].mxu0
          %v1035 = vadd.f32 %v910, %v1034
          %v1036 = vpop.f32.mrb[0].mxu0
          %v1037 = vpop.f32.mrb[0].mxu0
          %v1038 = vadd.f32 %v910, %v1037
          %v1039 = vpop.f32.mrb[0].mxu0
          %1040 = vmatprep.mubr.bf16.mxu0 0
          %1041 = vmatmul.mubr.bf16.gmra.mrb[0].mxu0 %v887
          %v1042 = vpop.f32.mrb[0].mxu0
          %v1043 = vadd.f32 %v910, %v1042
          %v1044 = vpop.f32.mrb[0].mxu0
          %v1045 = vpop.f32.mrb[0].mxu0
          %v1046 = vadd.f32 %v910, %v1045
          %v1047 = vpop.f32.mrb[0].mxu0
          %1048 = vmatprep.mubr.bf16.mxu0 0
          %1049 = vmatmul.mubr.bf16.gmra.mrb[0].mxu0 %v888
          %v1050 = vpop.f32.mrb[0].mxu0
          %v1051 = vadd.f32 %v910, %v1050
          %v1052 = vpop.f32.mrb[0].mxu0
          %v1053 = vpop.f32.mrb[0].mxu0
          %v1054 = vadd.f32 %v910, %v1053
          %v1055 = vpop.f32.mrb[0].mxu0
          %1056 = vdwg.mxu0
          %v1057 = vmax.f32 %v995, 0.0
          %v1058 = vmax.f32 %v998, 0.0
          %v1059 = vmax.f32 %v1003, 0.0
          %v1060 = vmax.f32 %v1006, 0.0
          %v1061 = vmax.f32 %v1011, 0.0
          %v1062 = vmax.f32 %v1014, 0.0
          %v1063 = vmax.f32 %v1019, 0.0
          %v1064 = vmax.f32 %v1022, 0.0
          %v1065 = vmax.f32 %v1027, 0.0
          %v1066 = vmax.f32 %v1030, 0.0
          %v1067 = vmax.f32 %v1035, 0.0
          %v1068 = vmax.f32 %v1038, 0.0
          %v1069 = vmax.f32 %v1043, 0.0
          %v1070 = vmax.f32 %v1046, 0.0
          %v1071 = vmax.f32 %v1051, 0.0
          %v1072 = vmax.f32 %v1054, 0.0
          %1073 = vst [vmem:[%s359] sm:$0xff] %v1057
          %1074 = vst [vmem:[%s359 + $0x8] sm:$0xff] %v1058
          %1075 = vst [vmem:[%s359 + $0x10] sm:$0xff] %v1059
          %1076 = vst [vmem:[%s359 + $0x18] sm:$0xff] %v1060
          %1077 = vst [vmem:[%s359 + $0x20] sm:$0xff] %v1061
          %1078 = vst [vmem:[%s359 + $0x28] sm:$0xff] %v1062
          %1079 = vst [vmem:[%s359 + $0x30] sm:$0xff] %v1063
          %1080 = vst [vmem:[%s359 + $0x38] sm:$0xff] %v1064
          %1081 = vst [vmem:[%s359 + $0x40] sm:$0xff] %v1065
          %1082 = vst [vmem:[%s359 + $0x48] sm:$0xff] %v1066
          %1083 = vst [vmem:[%s359 + $0x50] sm:$0xff] %v1067
          %1084 = vst [vmem:[%s359 + $0x58] sm:$0xff] %v1068
          %1085 = vst [vmem:[%s359 + $0x60] sm:$0xff] %v1069
          %1086 = vst [vmem:[%s359 + $0x68] sm:$0xff] %v1070
          %1087 = vst [vmem:[%s359 + $0x70] sm:$0xff] %v1071
          %1088 = vst [vmem:[%s359 + $0x78] sm:$0xff] %v1072
        $region72: #{tpu_custom_call.1} parent=43 // pred_fallthru
          _
        %s1089 = sand.u32 %s190, 1
        %s1090 = scalar_lea.sflag [#allocation7], %s1089
        %s1091 = sand.u32 %s190, 1
        %s1092 = smul.addr %s1091, 128
        %s1093 = scalar_lea.vmem [#allocation13], %s1092
        // Predicated region
        $region73: #{tpu_custom_call.1} parent=43 // pred_check
          %p1094 = pneg %p200
        $region74: #{tpu_custom_call.1} parent=43 // pred_check_branch
          %1096 = sbr.rel (%p1094) target = $region76
        $region75: #{tpu_custom_call.1} parent=43 // pred_region
          %s1097 = smul.u32 16, %s36
          %s1099 = ssub.s32 2048, 2048
          %1100 = vsyncadd %s1090, %s1099
          %s1101 = smul.addr %s1097, 128
          %s1102 = scalar_lea.hbm %s7, %s1101
          %s1103 = sshll.u32 %s1093, 4
          %s1104 = int_to_ptr.vmem [resolvable:$true] %s1103
          %1109 = dma.vmem_to_hbm [thread:$0]  %s1104, 2048, %s1102, %s1090, 128, 128, 8
        $region76: #{tpu_custom_call.1} parent=43 // pred_fallthru
          _
      $region44: #{tpu_custom_call.1} parent=5 // pred_fallthru
        _
      %p1110 = scmp.le.s32.totalorder 2, %s27
      // Predicated region
      $region77: #{tpu_custom_call.1} parent=5 // pred_check
        %p1111 = pneg %p1110
      $region78: #{tpu_custom_call.1} parent=5 // pred_check_branch
        %1113 = sbr.rel (%p1111) target = $region80
      $region79: #{tpu_custom_call.1} parent=5 // pred_region
        %s1114 = ssub.s32 %s27, 2
        // Predicated region
        $region81: #{tpu_custom_call.1} parent=79 // pred_check
          %p1115 = pneg %p206
        $region82: #{tpu_custom_call.1} parent=79 // pred_check_branch
          %1117 = sbr.rel (%p1115) target = $region84
        $region83: #{tpu_custom_call.1} parent=79 // pred_region
          %s1118 = sand.u32 %s191, 1
          %s1119 = scalar_lea.sflag [#allocation7], %s1118
          %s1120 = sand.u32 %s191, 1
          %s1121 = smul.addr %s1120, 128
          %s1122 = scalar_lea.vmem [#allocation13], %s1121
          %1123 = dma.done %s1119, 2048
        $region84: #{tpu_custom_call.1} parent=79 // pred_fallthru
          _
      $region80: #{tpu_custom_call.1} parent=5 // pred_fallthru
        _
    $region6: #{tpu_custom_call.1} parent=1 // loop_footer
      %s31 = sadd.s32 1, %s27
    $region7: #{tpu_custom_call.1} parent=1 // loop_footer_branch
      %26 = sbr.rel target = $region3
    $region8: #{tpu_custom_call.1} parent=1 // loop_exit
      _
    %1124 = vsyncpa [#allocation6], 1
    %s1125 = scalar_lea.sflag [#allocation6], 1
    %1126 = vsyncpa %s1125, 1
    %1127 = vsyncpa [#allocation9], 1
    %s1128 = scalar_lea.sflag [#allocation9], 1
    %1129 = vsyncpa %s1128, 1
    %1130 = vsyncpa [#allocation12], 1
    %1131 = vsyncpa [#allocation7], 1
    %s1132 = scalar_lea.sflag [#allocation7], 1
    %1133 = vsyncpa %s1132, 1

</llo_original>
